<compile_context>
chip_gen: v7x
topology: tpu7x:2x2x1
jax: 0.10.0
libtpu: 0.0.40
codegen_flags: <defaults>
</compile_context>

<pallas_src>
import functools

import jax
import jax.numpy as jnp
from jax.experimental import pallas as pl
from jax.experimental.pallas import tpu as pltpu

NUM_CLASSES = 19
IGNORE = 255
GAMMA = 1.0
EPS = 1e-7             # clamp eps (module's self.eps)
MAX_TILE_HW = 32768    # pixel lanes per grid step (multiple of 128)


def _pick_tile(hw, max_tile):
    if hw >= max_tile:
        return max_tile
    return ((hw + 127) // 128) * 128


def static_loss(logits_nchw, target, weights, *, max_tile=MAX_TILE_HW):
    """StaticLoss forward (size_average=True). logits_nchw: (B,C,H,W) float
    (f32 or bf16), target: (B,H,W) int (255 = ignore), weights: (C,) float."""
    B, C, H, W = logits_nchw.shape
    HW = H * W
    tile = _pick_tile(HW, max_tile)
    n_tiles = (HW + tile - 1) // tile

    # v7x: with B == 1 the batch axis gives only one unit of parallel work;
    # split the pixel-tile axis into 2 parallel halves when it divides evenly.
    split = 2 if (B == 1 and n_tiles >= 2 and n_tiles % 2 == 0) else 1
    tiles_per_part = n_tiles // split

    # Free reshapes only: no pad, no transpose, no upcast, no weight gather.
    x = logits_nchw.reshape(B, C, HW)
    t = target.reshape(B, 1, HW).astype(jnp.int32)
    w = weights.reshape(C, 1)

    def kernel(x_ref, t_ref, w_ref, out_ref):
        p = pl.program_id(1)
        i = pl.program_id(2)

        @pl.when(i == 0)
        def _():
            out_ref[...] = jnp.zeros_like(out_ref)

        xb = x_ref[...].astype(jnp.float32)            # (C, T)
        tb = t_ref[...]                                # (1, T) int32
        wc = w_ref[...].astype(jnp.float32)            # (C, 1)

        # softmax pieces over the class (sublane) axis; no full normalization.
        m = jnp.max(xb, axis=0, keepdims=True)         # (1, T)
        e = jnp.exp(xb - m)                            # (C, T)
        denom = jnp.sum(e, axis=0, keepdims=True)      # (1, T), always >= 1

        # weights[t] * exp(x[t] - m): one-hot sublane select with the class
        # weight column folded in (ignore pixels select nothing -> 0).
        cls = jax.lax.broadcasted_iota(jnp.int32, xb.shape, 0)
        we_sel = jnp.sum(jnp.where(cls == tb, e * wc, 0.0),
                         axis=0, keepdims=True)        # (1, T)

        # EUP approximate reciprocal + one Newton step (cheap VPU work)
        # instead of a full-precision divide.
        r = pl.reciprocal(denom, approx=True)
        r = r * (2.0 - denom * r)

        sel = jnp.clip(we_sel * r, EPS, 1.0 - EPS)     # (1, T)
        if GAMMA == 1.0:                               # trace-time specialization
            focal = 1.0 - sel
        else:
            focal = jnp.power(1.0 - sel, GAMMA)

        valid = (tb != IGNORE).astype(jnp.float32)     # (1, T)
        loss = -focal * jnp.log(sel) * valid           # (1, T)

        # Ragged-tail / split-overrun mask: select (not multiply) on BOTH rows
        # so garbage lanes (possibly NaN logits, bogus targets) contribute 0.
        col = (p * tiles_per_part + i) * tile + \
            jax.lax.broadcasted_iota(jnp.int32, (1, tile), 1)
        in_bounds = col < HW
        loss = jnp.where(in_bounds, loss, 0.0)
        valid = jnp.where(in_bounds, valid, 0.0)

        # Accumulate only the two live rows of the resident output block.
        out_ref[0:1, :] = out_ref[0:1, :] + loss
        out_ref[1:2, :] = out_ref[1:2, :] + valid

    out = pl.pallas_call(
        kernel,
        out_shape=jax.ShapeDtypeStruct((B, split, 2, tile), jnp.float32),
        grid_spec=pltpu.PrefetchScalarGridSpec(
            num_scalar_prefetch=0,
            grid=(B, split, tiles_per_part),
            in_specs=[
                pl.BlockSpec((None, C, tile),
                             lambda b, p, i: (b, 0, p * tiles_per_part + i)),
                pl.BlockSpec((None, 1, tile),
                             lambda b, p, i: (b, 0, p * tiles_per_part + i)),
                pl.BlockSpec((C, 1), lambda b, p, i: (0, 0)),
            ],
            out_specs=pl.BlockSpec((None, None, 2, tile),
                                   lambda b, p, i: (b, p, 0, 0)),
        ),
        compiler_params=pltpu.CompilerParams(
            dimension_semantics=("parallel", "parallel", "arbitrary"),
            vmem_limit_bytes=32 * 1024 * 1024),
    )(x, t, w)

    loss_sum = jnp.sum(out[:, :, 0, :])
    valid_count = jnp.sum(out[:, :, 1, :])
    # size_average=True -> mean over valid pixels only (matches input[valid]).
    # NaN if every pixel is ignore, matching the PyTorch empty-mean behavior.
    return loss_sum / valid_count


def _reference_loss(logits_nchw, target, weights):
    """Pure-JAX reference mirroring the PyTorch forward (raw=False path)."""
    B, C, H, W = logits_nchw.shape
    x = jnp.transpose(logits_nchw, (0, 2, 3, 1)).reshape(-1, C).astype(jnp.float32)
    t = target.reshape(-1)
    valid = (t != IGNORE)
    p = jax.nn.softmax(x, axis=1)
    oh = jax.nn.one_hot(jnp.where(valid, t, 0), C, dtype=jnp.float32)
    sel = jnp.max(weights[None, :].astype(jnp.float32) * p * oh, axis=1)
    sel = jnp.clip(sel, EPS, 1.0 - EPS)
    bl = -((1.0 - sel) ** GAMMA) * jnp.log(sel)
    return jnp.sum(bl * valid) / jnp.sum(valid)


if __name__ == "__main__":
    key = jax.random.PRNGKey(0)
    k1, k2, k3 = jax.random.split(key, 3)

    B, C, H, W = 2, NUM_CLASSES, 16, 16
    logits = jax.random.normal(k1, (B, C, H, W), dtype=jnp.float32)
    target = jax.random.randint(k2, (B, H, W), 0, NUM_CLASSES, dtype=jnp.int32)
    ignore_mask = jax.random.uniform(k3, (B, H, W)) < 0.1
    target = jnp.where(ignore_mask, IGNORE, target).astype(jnp.int32)

    # deterministic per-class weights (module's `weight` argument)
    weights = 1.0 + 0.01 * jnp.arange(NUM_CLASSES, dtype=jnp.float32)

    # approx reciprocal (+1 Newton step) -> slightly looser tolerance than 1e-5
    RTOL, ATOL = 1e-4, 1e-6

    loss = jax.jit(static_loss)(logits, target, weights)
    jax.block_until_ready(loss)
    ref = _reference_loss(logits, target, weights)
    assert jnp.isfinite(loss), "non-finite loss"
    assert jnp.allclose(loss, ref, rtol=RTOL, atol=ATOL), (loss, ref)

    # ragged pixel tail (HW not a multiple of 128): exercises in-kernel masking
    H2, W2 = 16, 17
    lo2 = jax.random.normal(k1, (B, C, H2, W2), dtype=jnp.float32)
    tg2 = jax.random.randint(k2, (B, H2, W2), 0, NUM_CLASSES, dtype=jnp.int32)
    loss2 = jax.jit(static_loss)(lo2, tg2, weights)
    ref2 = _reference_loss(lo2, tg2, weights)
    assert jnp.allclose(loss2, ref2, rtol=RTOL, atol=ATOL), (loss2, ref2)

    # B == 1 with multiple pixel tiles: exercises the split (v7x) grid path
    H3, W3 = 16, 64
    lo3 = jax.random.normal(k3, (1, C, H3, W3), dtype=jnp.float32)
    tg3 = jax.random.randint(k1, (1, H3, W3), 0, NUM_CLASSES, dtype=jnp.int32)
    loss3 = jax.jit(functools.partial(static_loss, max_tile=512))(lo3, tg3, weights)
    ref3 = _reference_loss(lo3, tg3, weights)
    assert jnp.allclose(loss3, ref3, rtol=RTOL, atol=ATOL), (loss3, ref3)

    jax.block_until_ready((loss, loss2, loss3))
    print("KERNEL_OK")
</pallas_src>

<mosaic_0001>
module attributes {stable_mosaic.version = 11 : i64} {
  func.func @kernel(%arg0: i32, %arg1: i32, %arg2: i32, %arg3: memref<1x19x256xf32, #tpu.memory_space<vmem>>, %arg4: memref<1x1x256xi32, #tpu.memory_space<vmem>>, %arg5: memref<19x1xf32, #tpu.memory_space<vmem>>, %arg6: memref<1x1x2x256xf32, #tpu.memory_space<vmem>>) attributes {dimension_semantics = [#tpu.dimension_semantics<parallel>, #tpu.dimension_semantics<parallel>, #tpu.dimension_semantics<arbitrary>], iteration_bounds = array<i64: 2, 1, 1>, scalar_prefetch = 0 : i64, scratch_operands = 0 : i64, tpu.core_type = #tpu.core_type<tc>, window_params = [{transform_indices = @transform_0, window_bounds = array<i64: 1, 19, 256>}, {transform_indices = @transform_1, window_bounds = array<i64: 1, 1, 256>}, {pipeline_mode = #tpu.pipeline_mode<synchronous>, transform_indices = @transform_2, window_bounds = array<i64: 19, 1>}, {transform_indices = @transform_3, window_bounds = array<i64: 1, 1, 2, 256>}]} {
    %c0_i32 = arith.constant 0 : i32
    %0 = arith.cmpi eq, %arg2, %c0_i32 : i32
    %1 = arith.extui %0 : i1 to i32
    %c0_i32_0 = arith.constant 0 : i32
    %2 = arith.cmpi ne, %1, %c0_i32_0 : i32
    scf.if %2 {
      %cst_34 = arith.constant 0.000000e+00 : f32
      %69 = vector.broadcast %cst_34 : f32 to vector<2x256xf32>
      %c0_35 = arith.constant 0 : index
      %c0_36 = arith.constant 0 : index
      %c0_37 = arith.constant 0 : index
      %c0_38 = arith.constant 0 : index
      %70 = vector.load %arg6[%c0_35, %c0_36, %c0_37, %c0_38] : memref<1x1x2x256xf32, #tpu.memory_space<vmem>>, vector<1x1x2x256xf32>
      %71 = vector.shape_cast %70 : vector<1x1x2x256xf32> to vector<2x256xf32>
      %72 = vector.shape_cast %69 : vector<2x256xf32> to vector<1x1x2x256xf32>
      tpu.vector_store %arg6[%c0_35, %c0_36, %c0_37, %c0_38], %72 {strides = array<i32>} : memref<1x1x2x256xf32, #tpu.memory_space<vmem>>, vector<1x1x2x256xf32>,
    } else {
    }
    %c0 = arith.constant 0 : index
    %c0_1 = arith.constant 0 : index
    %c0_2 = arith.constant 0 : index
    %3 = vector.load %arg3[%c0, %c0_1, %c0_2] : memref<1x19x256xf32, #tpu.memory_space<vmem>>, vector<1x19x256xf32>
    %4 = vector.shape_cast %3 : vector<1x19x256xf32> to vector<19x256xf32>
    %c0_3 = arith.constant 0 : index
    %c0_4 = arith.constant 0 : index
    %c0_5 = arith.constant 0 : index
    %5 = vector.load %arg4[%c0_3, %c0_4, %c0_5] : memref<1x1x256xi32, #tpu.memory_space<vmem>>, vector<1x1x256xi32>
    %6 = vector.shape_cast %5 : vector<1x1x256xi32> to vector<1x256xi32>
    %c0_6 = arith.constant 0 : index
    %c0_7 = arith.constant 0 : index
    %7 = vector.load %arg5[%c0_6, %c0_7] : memref<19x1xf32, #tpu.memory_space<vmem>>, vector<19x1xf32>
    %cst = arith.constant dense<0xFF800000> : vector<256xf32>
    %8 = vector.multi_reduction <maximumf>, %4, %cst [0] : vector<19x256xf32> to vector<256xf32>
    %9 = vector.shape_cast %8 : vector<256xf32> to vector<1x256xf32>
    %10 = vector.broadcast %9 : vector<1x256xf32> to vector<19x256xf32>
    %11 = arith.subf %4, %10 : vector<19x256xf32>
    %12 = math.exp %11 : vector<19x256xf32>
    %cst_8 = arith.constant dense<0.000000e+00> : vector<256xf32>
    %13 = vector.multi_reduction <add>, %12, %cst_8 [0] : vector<19x256xf32> to vector<256xf32>
    %14 = vector.shape_cast %13 : vector<256xf32> to vector<1x256xf32>
    %15 = tpu.iota {dimensions = array<i32: 0>} : vector<19x256xi32>
    %16 = vector.broadcast %6 : vector<1x256xi32> to vector<19x256xi32>
    %17 = arith.cmpi eq, %15, %16 : vector<19x256xi32>
    %18 = vector.broadcast %7 : vector<19x1xf32> to vector<19x256xf32>
    %19 = arith.mulf %12, %18 : vector<19x256xf32>
    %cst_9 = arith.constant 0.000000e+00 : f32
    %20 = vector.broadcast %cst_9 : f32 to vector<19x256xf32>
    %21 = arith.select %17, %19, %20 : vector<19x256xi1>, vector<19x256xf32>
    %cst_10 = arith.constant dense<0.000000e+00> : vector<256xf32>
    %22 = vector.multi_reduction <add>, %21, %cst_10 [0] : vector<19x256xf32> to vector<256xf32>
    %23 = vector.shape_cast %22 : vector<256xf32> to vector<1x256xf32>
    %24 = tpu.reciprocal %14 {approx = true} : vector<1x256xf32> -> vector<1x256xf32>
    %25 = arith.mulf %14, %24 : vector<1x256xf32>
    %cst_11 = arith.constant 2.000000e+00 : f32
    %26 = vector.broadcast %cst_11 : f32 to vector<1x256xf32>
    %27 = arith.subf %26, %25 : vector<1x256xf32>
    %28 = arith.mulf %24, %27 : vector<1x256xf32>
    %29 = arith.mulf %23, %28 : vector<1x256xf32>
    %cst_12 = arith.constant 1.000000e-07 : f32
    %cst_13 = arith.constant 0.99999988 : f32
    %30 = vector.broadcast %cst_12 : f32 to vector<1x256xf32>
    %31 = arith.maximumf %30, %29 : vector<1x256xf32>
    %32 = vector.broadcast %cst_13 : f32 to vector<1x256xf32>
    %33 = arith.minimumf %32, %31 : vector<1x256xf32>
    %cst_14 = arith.constant 1.000000e+00 : f32
    %34 = vector.broadcast %cst_14 : f32 to vector<1x256xf32>
    %35 = arith.subf %34, %33 : vector<1x256xf32>
    %c255_i32 = arith.constant 255 : i32
    %36 = vector.broadcast %c255_i32 : i32 to vector<1x256xi32>
    %37 = arith.cmpi ne, %6, %36 : vector<1x256xi32>
    %38 = arith.extui %37 : vector<1x256xi1> to vector<1x256xi32>
    %39 = arith.sitofp %38 : vector<1x256xi32> to vector<1x256xf32>
    %cst_15 = arith.constant 0.000000e+00 : f32
    %40 = vector.broadcast %cst_15 : f32 to vector<1x256xf32>
    %41 = arith.subf %40, %35 : vector<1x256xf32>
    %42 = math.log %33 : vector<1x256xf32>
    %43 = arith.mulf %41, %42 : vector<1x256xf32>
    %44 = arith.mulf %43, %39 : vector<1x256xf32>
    %c1_i32 = arith.constant 1 : i32
    %45 = arith.muli %arg1, %c1_i32 : i32
    %46 = arith.addi %45, %arg2 : i32
    %c256_i32 = arith.constant 256 : i32
    %47 = arith.muli %46, %c256_i32 : i32
    %48 = tpu.iota {dimensions = array<i32: 1>} : vector<1x256xi32>
    %49 = vector.broadcast %47 : i32 to vector<1x256xi32>
    %50 = arith.addi %49, %48 : vector<1x256xi32>
    %c256_i32_16 = arith.constant 256 : i32
    %51 = vector.broadcast %c256_i32_16 : i32 to vector<1x256xi32>
    %52 = arith.cmpi slt, %50, %51 : vector<1x256xi32>
    %cst_17 = arith.constant 0.000000e+00 : f32
    %53 = vector.broadcast %cst_17 : f32 to vector<1x256xf32>
    %54 = arith.select %52, %44, %53 : vector<1x256xi1>, vector<1x256xf32>
    %cst_18 = arith.constant 0.000000e+00 : f32
    %55 = vector.broadcast %cst_18 : f32 to vector<1x256xf32>
    %56 = arith.select %52, %39, %55 : vector<1x256xi1>, vector<1x256xf32>
    %c0_19 = arith.constant 0 : index
    %c0_20 = arith.constant 0 : index
    %c0_21 = arith.constant 0 : index
    %c0_22 = arith.constant 0 : index
    %57 = vector.load %arg6[%c0_19, %c0_20, %c0_21, %c0_22] : memref<1x1x2x256xf32, #tpu.memory_space<vmem>>, vector<1x1x1x256xf32>
    %58 = vector.shape_cast %57 : vector<1x1x1x256xf32> to vector<1x256xf32>
    %59 = arith.addf %58, %54 : vector<1x256xf32>
    %c0_23 = arith.constant 0 : index
    %c0_24 = arith.constant 0 : index
    %c0_25 = arith.constant 0 : index
    %c0_26 = arith.constant 0 : index
    %60 = vector.load %arg6[%c0_23, %c0_24, %c0_25, %c0_26] : memref<1x1x2x256xf32, #tpu.memory_space<vmem>>, vector<1x1x1x256xf32>
    %61 = vector.shape_cast %60 : vector<1x1x1x256xf32> to vector<1x256xf32>
    %62 = vector.shape_cast %59 : vector<1x256xf32> to vector<1x1x1x256xf32>
    tpu.vector_store %arg6[%c0_23, %c0_24, %c0_25, %c0_26], %62 {strides = array<i32>} : memref<1x1x2x256xf32, #tpu.memory_space<vmem>>, vector<1x1x1x256xf32>,
    %c0_27 = arith.constant 0 : index
    %c0_28 = arith.constant 0 : index
    %c1 = arith.constant 1 : index
    %c0_29 = arith.constant 0 : index
    %63 = vector.load %arg6[%c0_27, %c0_28, %c1, %c0_29] : memref<1x1x2x256xf32, #tpu.memory_space<vmem>>, vector<1x1x1x256xf32>
    %64 = vector.shape_cast %63 : vector<1x1x1x256xf32> to vector<1x256xf32>
    %65 = arith.addf %64, %56 : vector<1x256xf32>
    %c0_30 = arith.constant 0 : index
    %c0_31 = arith.constant 0 : index
    %c1_32 = arith.constant 1 : index
    %c0_33 = arith.constant 0 : index
    %66 = vector.load %arg6[%c0_30, %c0_31, %c1_32, %c0_33] : memref<1x1x2x256xf32, #tpu.memory_space<vmem>>, vector<1x1x1x256xf32>
    %67 = vector.shape_cast %66 : vector<1x1x1x256xf32> to vector<1x256xf32>
    %68 = vector.shape_cast %65 : vector<1x256xf32> to vector<1x1x1x256xf32>
    tpu.vector_store %arg6[%c0_30, %c0_31, %c1_32, %c0_33], %68 {strides = array<i32>} : memref<1x1x2x256xf32, #tpu.memory_space<vmem>>, vector<1x1x1x256xf32>,
    return
  }
  func.func @transform_0(%arg0: i32, %arg1: i32, %arg2: i32) -> (i32, i32, i32) {
    %c1_i32 = arith.constant 1 : i32
    %0 = arith.muli %arg1, %c1_i32 : i32
    %1 = arith.addi %0, %arg2 : i32
    %c0_i32 = arith.constant 0 : i32
    %c0_i32_0 = arith.constant 0 : i32
    return %arg0, %c0_i32, %1 : i32, i32, i32
  }
  func.func @transform_1(%arg0: i32, %arg1: i32, %arg2: i32) -> (i32, i32, i32) {
    %c1_i32 = arith.constant 1 : i32
    %0 = arith.muli %arg1, %c1_i32 : i32
    %1 = arith.addi %0, %arg2 : i32
    %c0_i32 = arith.constant 0 : i32
    %c0_i32_0 = arith.constant 0 : i32
    return %arg0, %c0_i32, %1 : i32, i32, i32
  }
  func.func @transform_2(%arg0: i32, %arg1: i32, %arg2: i32) -> (i32, i32) {
    %c0_i32 = arith.constant 0 : i32
    %c0_i32_0 = arith.constant 0 : i32
    %c0_i32_1 = arith.constant 0 : i32
    return %c0_i32, %c0_i32_0 : i32, i32
  }
  func.func @transform_3(%arg0: i32, %arg1: i32, %arg2: i32) -> (i32, i32, i32, i32) {
    %c0_i32 = arith.constant 0 : i32
    %c0_i32_0 = arith.constant 0 : i32
    %c0_i32_1 = arith.constant 0 : i32
    return %arg0, %arg1, %c0_i32, %c0_i32_0 : i32, i32, i32, i32
  }
}

</mosaic_0001>

<llo_original>
// kernel: static_loss.1
$region0: #{static_loss.1}
  #allocation0 [shape = 'u32[]', space=smem, size = 0x4, offset = 0x4, fixed_abs, tag = 'smem constant byte address 0x4 - core index']
  #allocation1 [shape = 'u32[144,128]{1,0:T(1,128)}', space=vmem, size = 0x12000, scoped, tag = 'internal scratch']
  %s0 = inlined_call_operand.vmem [shape: f32[2,19,256], index: 0, kind: input, shape index: {}]
  %s1 = inlined_call_operand.vmem [shape: s32[2,1,256], index: 1, kind: input, shape index: {}]
  %s2 = inlined_call_operand.vmem [shape: f32[19,1], index: 2, kind: input, shape index: {}]
  %s3 = inlined_call_operand.vmem [shape: f32[2,1,2,256], index: 3, kind: output, shape index: {}]
  %s4 = sld [smem:[#allocation0]]
  $region49: #{static_loss.1} parent=0
    _
  %s6 = ssub.s32 1, %s4
  %s7 = scalar_select 0, %s6, %s4
  loop: start=0, step=1, limit=4
  $region2: #{static_loss.1} parent=0 // loop_pre_header
    _
  $region3: #{static_loss.1} parent=0 // loop_header
    %s9 = sphi 0, %s13
    %p10 = scmp.ge.s32.totalorder %s9, 4
    %s16 = sphi 0, %s35
    %s17 = sphi 0, %s31
    %s18 = sphi 0, %s27
    %s19 = sphi 0, %s16
    %s20 = sphi 0, %s17
    %s21 = sphi 0, %s18
    %s22 = sphi 0, %s19
    %s23 = sphi 0, %s20
    %s24 = sphi 0, %s21
    %s42 = sphi 0, %s44
    %s45 = sphi 0, %s42
    %s46 = sphi 0, %s45
    %s62 = sphi 0, %s46
    %s72 = sphi 0, %s74
    %s75 = sphi 0, %s72
    %s76 = sphi 0, %s75
    %s92 = sphi 0, %s76
    %s96 = sphi 0, %s96
    %s98 = sphi 0, %s96
    %s99 = sphi 0, %s98
    %s113 = sphi 0, %s99
    %s121 = sphi 0, %s123
    %s124 = sphi 0, %s121
    %s125 = sphi 0, %s124
    %s141 = sphi 0, %s125
  $region4: #{static_loss.1} parent=0 // loop_header_branch
    %12 = sbr.rel (%p10) target = $region8
  $region5: #{static_loss.1} parent=0 // loop_body
    %s14 = ssub.s32 %s9, 1
    %s15 = ssub.s32 %s9, 2
    %s25 = sadd.s32 1, %s18
    %p26 = scmp.ge.s32.totalorder %s25, 1
    %s27 = scalar_select %p26, 0, %s25
    %s28 = sadd.s32 1, %s17
    %s29 = scalar_select %p26, %s28, %s17
    %p30 = scmp.ge.s32.totalorder %s29, 1
    %s31 = scalar_select %p30, 0, %s29
    %s32 = sadd.s32 1, %s16
    %s33 = scalar_select %p30, %s32, %s16
    %p34 = scmp.ge.s32.totalorder %s33, 2
    %s35 = scalar_select %p34, 0, %s33
    %s36 = sadd.s32 %s17, %s18
    %s37 = sadd.s32 %s31, %s27
    %s38 = ssub.s32 %s16, %s35
    %s39 = ssub.s32 %s36, %s37
    %s40 = sor.u32 %s38, %s39
    %p41 = scmp.eq.s32.totalorder %s40, 0
    %s43 = sadd.s32 %s42, 1
    %s44 = scalar_select %p41, %s42, %s43
    %p47 = pneg %p41
    %p48 = scmp.eq.s32.totalorder %s9, 1
    %p49 = por %p47, %p48
    %p50 = scmp.ne.s32.totalorder %s42, %s45
    %p51 = scmp.eq.s32.totalorder %s9, 0
    %p52 = por %p50, %p51
    %p53 = scmp.ne.s32.totalorder %s42, %s45
    %p54 = scmp.eq.s32.totalorder %s14, 1
    %p55 = por %p53, %p54
    %p56 = scmp.ne.s32.totalorder %s45, %s46
    %p57 = scmp.eq.s32.totalorder %s14, 0
    %p58 = por %p56, %p57
    %p59 = scmp.ne.s32.totalorder %s45, %s46
    %p60 = scmp.eq.s32.totalorder %s15, 1
    %p61 = por %p59, %p60
    %p63 = scmp.ne.s32.totalorder %s46, %s62
    %p64 = scmp.eq.s32.totalorder %s15, 0
    %p65 = por %p63, %p64
    %s66 = sadd.s32 %s17, %s18
    %s67 = sadd.s32 %s31, %s27
    %s68 = ssub.s32 %s16, %s35
    %s69 = ssub.s32 %s66, %s67
    %s70 = sor.u32 %s68, %s69
    %p71 = scmp.eq.s32.totalorder %s70, 0
    %s73 = sadd.s32 %s72, 1
    %s74 = scalar_select %p71, %s72, %s73
    %p77 = pneg %p71
    %p78 = scmp.eq.s32.totalorder %s9, 1
    %p79 = por %p77, %p78
    %p80 = scmp.ne.s32.totalorder %s72, %s75
    %p81 = scmp.eq.s32.totalorder %s9, 0
    %p82 = por %p80, %p81
    %p83 = scmp.ne.s32.totalorder %s72, %s75
    %p84 = scmp.eq.s32.totalorder %s14, 1
    %p85 = por %p83, %p84
    %p86 = scmp.ne.s32.totalorder %s75, %s76
    %p87 = scmp.eq.s32.totalorder %s14, 0
    %p88 = por %p86, %p87
    %p89 = scmp.ne.s32.totalorder %s75, %s76
    %p90 = scmp.eq.s32.totalorder %s15, 1
    %p91 = por %p89, %p90
    %p93 = scmp.ne.s32.totalorder %s76, %s92
    %p94 = scmp.eq.s32.totalorder %s15, 0
    %p95 = por %p93, %p94
    %s97 = sadd.s32 %s96, 1
    %p100 = scmp.eq.s32.totalorder %s9, 1
    %p101 = scmp.ne.s32.totalorder %s96, %s98
    %p102 = scmp.eq.s32.totalorder %s9, 0
    %p103 = por %p101, %p102
    %p104 = scmp.ne.s32.totalorder %s96, %s98
    %p105 = scmp.eq.s32.totalorder %s14, 1
    %p106 = por %p104, %p105
    %p107 = scmp.ne.s32.totalorder %s98, %s99
    %p108 = scmp.eq.s32.totalorder %s14, 0
    %p109 = por %p107, %p108
    %p110 = scmp.ne.s32.totalorder %s98, %s99
    %p111 = scmp.eq.s32.totalorder %s15, 1
    %p112 = por %p110, %p111
    %p114 = scmp.ne.s32.totalorder %s99, %s113
    %p115 = scmp.eq.s32.totalorder %s15, 0
    %p116 = por %p114, %p115
    %s117 = ssub.s32 %s16, %s35
    %s118 = ssub.s32 %s17, %s31
    %s119 = sor.u32 %s117, %s118
    %p120 = scmp.eq.s32.totalorder %s119, 0
    %s122 = sadd.s32 %s121, 1
    %s123 = scalar_select %p120, %s121, %s122
    %p126 = pneg %p120
    %p127 = scmp.eq.s32.totalorder %s9, 1
    %p128 = por %p126, %p127
    %p129 = scmp.ne.s32.totalorder %s121, %s124
    %p130 = scmp.eq.s32.totalorder %s9, 0
    %p131 = por %p129, %p130
    %p132 = scmp.ne.s32.totalorder %s121, %s124
    %p133 = scmp.eq.s32.totalorder %s14, 1
    %p134 = por %p132, %p133
    %p135 = scmp.ne.s32.totalorder %s124, %s125
    %p136 = scmp.eq.s32.totalorder %s14, 0
    %p137 = por %p135, %p136
    %p138 = scmp.ne.s32.totalorder %s124, %s125
    %p139 = scmp.eq.s32.totalorder %s15, 1
    %p140 = por %p138, %p139
    %p142 = scmp.ne.s32.totalorder %s125, %s141
    %p143 = scmp.eq.s32.totalorder %s15, 0
    %p144 = por %p142, %p143
    %p145 = scmp.le.s32.totalorder 1, %s9
    %p146 = scmp.lt.s32.totalorder %s9, 3
    %p147 = pnand %p145, %p146
    %p148 = pneg %p147
    // Predicated region
    $region9: #{static_loss.1} parent=5 // pred_check
      _
    $region10: #{static_loss.1} parent=5 // pred_check_branch
      %150 = sbr.rel (%p147) target = $region12
    $region11: #{static_loss.1} parent=5 // pred_region
      %s151 = ssub.s32 %s9, 1
      // Predicated region
      $region13: #{static_loss.1} parent=11 // pred_check
        %p152 = pneg %p109
      $region14: #{static_loss.1} parent=11 // pred_check_branch
        %154 = sbr.rel (%p152) target = $region16
      $region15: #{static_loss.1} parent=11 // pred_region
        _
      $region16: #{static_loss.1} parent=11 // pred_fallthru
        _
    $region12: #{static_loss.1} parent=5 // pred_fallthru
      _
    %p155 = scmp.lt.s32.totalorder %s9, 2
    // Predicated region
    $region17: #{static_loss.1} parent=5 // pred_check
      %p156 = pneg %p155
    $region18: #{static_loss.1} parent=5 // pred_check_branch
      %158 = sbr.rel (%p156) target = $region20
    $region19: #{static_loss.1} parent=5 // pred_region
      // Predicated region
      $region21: #{static_loss.1} parent=19 // pred_check
        %p159 = pneg %p52
      $region22: #{static_loss.1} parent=19 // pred_check_branch
        %161 = sbr.rel (%p159) target = $region24
      $region23: #{static_loss.1} parent=19 // pred_region
        %s162 = sadd.s32 %s17, %s18
        %s163 = smul.u32 2, %s162
        %p164 = scmp.lt.s32.totalorder %s16, 1
        %s165 = scalar_select %p164, %s16, 1
        %p166 = scmp.lt.s32.totalorder %s163, 1
        %s167 = scalar_select %p166, %s163, 1
        %s168 = smul.addr %s165, 6
        %s169 = sadd.s32 %s167, %s168
        %s170 = smul.addr %s169, 8
        %s171 = scalar_lea.vmem %s0, %s170
        %s172 = sadd.s32 %s17, %s18
        %s173 = smul.u32 2, %s172
      $region24: #{static_loss.1} parent=19 // pred_fallthru
        _
      // Predicated region
      $region25: #{static_loss.1} parent=19 // pred_check
        %p174 = pneg %p82
      $region26: #{static_loss.1} parent=19 // pred_check_branch
        %176 = sbr.rel (%p174) target = $region28
      $region27: #{static_loss.1} parent=19 // pred_region
        %s177 = sadd.s32 %s17, %s18
        %s178 = smul.u32 2, %s177
        %p179 = scmp.lt.s32.totalorder %s16, 1
        %s180 = scalar_select %p179, %s16, 1
        %p181 = scmp.lt.s32.totalorder %s178, 1
        %s182 = scalar_select %p181, %s178, 1
        %s183 = smul.addr %s180, 2
        %s184 = sadd.s32 %s182, %s183
        %s185 = scalar_lea.vmem %s1, %s184
        %s186 = sadd.s32 %s17, %s18
        %s187 = smul.u32 2, %s186
      $region28: #{static_loss.1} parent=19 // pred_fallthru
        _
    $region20: #{static_loss.1} parent=5 // pred_fallthru
      _
    %p188 = scmp.le.s32.totalorder 1, %s9
    %p189 = scmp.lt.s32.totalorder %s9, 3
    %p190 = pnand %p188, %p189
    %p191 = pneg %p190
    // Predicated region
    $region29: #{static_loss.1} parent=5 // pred_check
      _
    $region30: #{static_loss.1} parent=5 // pred_check_branch
      %193 = sbr.rel (%p190) target = $region32
    $region31: #{static_loss.1} parent=5 // pred_region
      %s194 = ssub.s32 %s9, 1
      %s195 = sadd.s32 %s20, %s21
      %s196 = smul.u32 2, %s195
      %p197 = scmp.lt.s32.totalorder %s19, 1
      %s198 = scalar_select %p197, %s19, 1
      %p199 = scmp.lt.s32.totalorder %s196, 1
      %s200 = scalar_select %p199, %s196, 1
      %s201 = smul.addr %s198, 6
      %s202 = sadd.s32 %s200, %s201
      %s203 = smul.addr %s202, 8
      %s204 = scalar_lea.vmem %s0, %s203
      %p205 = pneg %p58
      %p206 = pneg %p55
      %s207 = sadd.s32 %s20, %s21
      %s208 = smul.u32 2, %s207
      %p209 = scmp.lt.s32.totalorder %s19, 1
      %s210 = scalar_select %p209, %s19, 1
      %p211 = scmp.lt.s32.totalorder %s208, 1
      %s212 = scalar_select %p211, %s208, 1
      %s213 = smul.addr %s210, 2
      %s214 = sadd.s32 %s212, %s213
      %s215 = scalar_lea.vmem %s1, %s214
      %p216 = pneg %p88
      %p217 = pneg %p85
      %p218 = pneg %p109
      %p219 = pneg %p106
      %p220 = pneg %p137
      %p221 = pneg %p134
      %p222 = scmp.lt.s32.totalorder %s19, 1
      %s223 = scalar_select %p222, %s19, 1
      %p224 = scmp.lt.s32.totalorder %s20, 0
      %s225 = scalar_select %p224, %s20, 0
      %s226 = smul.addr %s225, 2
      %s227 = smul.addr %s223, 2
      %s228 = sadd.s32 %s226, %s227
      %s229 = smul.addr %s228, 2
      %s230 = scalar_lea.vmem %s3, %s229
      %s231 = sadd.s32 %s20, %s21
      %s232 = smul.u32 2, %s231
      %p233 = scmp.lt.s32.totalorder %s19, 1
      %s234 = scalar_select %p233, %s19, 1
      %p235 = scmp.lt.s32.totalorder %s232, 1
      %s236 = scalar_select %p235, %s232, 1
      %s237 = smul.addr %s234, 6
      %s238 = sadd.s32 %s236, %s237
      %s239 = smul.addr %s238, 8
      %s240 = scalar_lea.vmem %s0, %s239
      %s241 = sadd.s32 %s20, %s21
      %s242 = smul.u32 2, %s241
      %s243 = sadd.s32 %s20, %s21
      %s244 = smul.u32 2, %s243
      %p245 = scmp.lt.s32.totalorder %s19, 1
      %s246 = scalar_select %p245, %s19, 1
      %p247 = scmp.lt.s32.totalorder %s244, 1
      %s248 = scalar_select %p247, %s244, 1
      %s249 = smul.addr %s246, 2
      %s250 = sadd.s32 %s248, %s249
      %s251 = scalar_lea.vmem %s1, %s250
      %s252 = sadd.s32 %s20, %s21
      %s253 = smul.u32 2, %s252
      %p254 = scmp.lt.s32.totalorder %s19, 1
      %s255 = scalar_select %p254, %s19, 1
      %p256 = scmp.lt.s32.totalorder %s20, 0
      %s257 = scalar_select %p256, %s20, 0
      %s258 = smul.addr %s257, 2
      %s259 = smul.addr %s255, 2
      %s260 = sadd.s32 %s258, %s259
      %s261 = smul.addr %s260, 2
      %s262 = scalar_lea.vmem %s3, %s261
      %p263 = scmp.eq.s32.totalorder %s21, 0
      // Predicated region
      $region33: #{static_loss.1} parent=31 // pred_check
        %p264 = pneg %p263
      $region34: #{static_loss.1} parent=31 // pred_check_branch
        %266 = sbr.rel (%p264) target = $region36
      $region35: #{static_loss.1} parent=31 // pred_region
        %267 = vst [vmem:[%s262] sm:$0xf] 0.0
      $region36: #{static_loss.1} parent=31 // pred_fallthru
        _
      %v268 = vld [vmem:[%s240] sm:$0xff]
      %v269 = vld [vmem:[%s240 + $0x8] sm:$0xff]
      %v270 = vld [vmem:[%s240 + $0x10] sm:$0xff]
      %v271 = vld [vmem:[%s240 + $0x18] sm:$0xff]
      %v272 = vld [vmem:[%s240 + $0x20] sm:$0x7]
      %v273 = vld [vmem:[%s240 + $0x28] sm:$0x7]
      %v274 = vld [vmem:[%s251] sm:$0x3]
      %v275 = vld [vmem:[%s2] sm:$0xff]
      %v276 = vld [vmem:[%s2 + $0x8] sm:$0xff]
      %v277 = vld [vmem:[%s2 + $0x10] sm:$0x7]
      %vm278 = vcmask 1042432
      %v279 = vsel %vm278, %v272, -inf
      %v280 = vmax.f32 %v268, %v279
      %v281 = vmax.f32 %v280, %v270
      %v282 = vrot.slane %v281, 4
      %v283 = vmax.f32 %v281, %v282
      %v284 = vrot.slane %v283, 2
      %v285 = vmax.f32 %v283, %v284
      %v286 = vrot.slane %v285, 1
      %v287 = vmax.f32 %v285, %v286
      %v288 = vsel %vm278, %v273, -inf
      %v289 = vmax.f32 %v269, %v288
      %v290 = vmax.f32 %v289, %v271
      %v291 = vrot.slane %v290, 4
      %v292 = vmax.f32 %v290, %v291
      %v293 = vrot.slane %v292, 2
      %v294 = vmax.f32 %v292, %v293
      %v295 = vrot.slane %v294, 1
      %v296 = vmax.f32 %v294, %v295
      %v297 = vsub.f32 %v268, %v287
      %v298 = vsub.f32 %v269, %v296
      %v299 = vsub.f32 %v270, %v287
      %v300 = vsub.f32 %v271, %v296
      %v301 = vsub.f32 %v272, %v287
      %v302 = vsub.f32 %v273, %v296
      %v303 = vmul.f32 %v297, 1.442695
      %v304 = vpow.pop %v303
      %v305 = vmul.f32 %v298, 1.442695
      %v306 = vpow.pop %v305
      %v307 = vmul.f32 %v299, 1.442695
      %v308 = vpow.pop %v307
      %v309 = vmul.f32 %v300, 1.442695
      %v310 = vpow.pop %v309
      %v311 = vmul.f32 %v301, 1.442695
      %v312 = vpow.pop %v311
      %v313 = vmul.f32 %v302, 1.442695
      %v314 = vpow.pop %v313
      %v315 = vadd.f32 %v304, %v308
      %v316 = vsel %vm278, %v312, 0.0
      %v317 = vadd.f32 %v315, %v316
      %v318 = vrot.slane %v317, 4
      %v319 = vadd.f32 %v317, %v318
      %v320 = vrot.slane %v319, 2
      %v321 = vadd.f32 %v319, %v320
      %v322 = vrot.slane %v321, 1
      %v323 = vadd.f32 %v321, %v322
      %v324 = vadd.f32 %v306, %v310
      %v325 = vsel %vm278, %v314, 0.0
      %v326 = vadd.f32 %v324, %v325
      %v327 = vrot.slane %v326, 4
      %v328 = vadd.f32 %v326, %v327
      %v329 = vrot.slane %v328, 2
      %v330 = vadd.f32 %v328, %v329
      %v331 = vrot.slane %v330, 1
      %v332 = vadd.f32 %v330, %v331
      %v333 = vlaneseq
      %v334 = vshrl.u32 %v333, 7
      %v335 = vadd.s32 %v334, 8
      %v336 = vadd.s32 %v334, 16
      %v337 = vlaneseq
      %v338 = vshrl.u32 %v337, 7
      %v339 = vsub.s32 0, %v338
      %v340 = vrot.slane %v274, %v339
      %v341 = vlaneseq
      %v342 = vshrl.u32 %v341, 7
      %v343 = vsub.s32 1, %v342
      %v344 = vrot.slane %v274, %v343
      %vm345 = vcmp.eq.s32.totalorder %v334, %v340
      %vm346 = vcmp.eq.s32.totalorder %v334, %v344
      %vm347 = vcmp.eq.s32.totalorder %v335, %v340
      %vm348 = vcmp.eq.s32.totalorder %v335, %v344
      %vm349 = vcmp.eq.s32.totalorder %v336, %v340
      %vm350 = vcmp.eq.s32.totalorder %v336, %v344
      %352 = vset.pattern.permute.xlu0 0
      %353 = vperm.xlu0 %352, %v275
      %v354 = vpop.permute.xlu0 %353
      %357 = vset.pattern.permute.xlu0 0
      %358 = vperm.xlu0 %357, %v276
      %v359 = vpop.permute.xlu0 %358
      %362 = vset.pattern.permute.xlu0 0
      %363 = vperm.xlu0 %362, %v277
      %v364 = vpop.permute.xlu0 %363
      %v366 = vmul.f32 %v304, %v354
      %v367 = vmul.f32 %v306, %v354
      %v368 = vmul.f32 %v308, %v359
      %v369 = vmul.f32 %v310, %v359
      %v370 = vmul.f32 %v312, %v364
      %v371 = vmul.f32 %v314, %v364
      %v372 = vsel %vm345, %v366, 0.0
      %v373 = vsel %vm346, %v367, 0.0
      %v374 = vsel %vm347, %v368, 0.0
      %v375 = vsel %vm348, %v369, 0.0
      %v376 = vsel %vm349, %v370, 0.0
      %v377 = vsel %vm350, %v371, 0.0
      %v378 = vadd.f32 %v372, %v374
      %v379 = vsel %vm278, %v376, 0.0
      %v380 = vadd.f32 %v378, %v379
      %v381 = vrot.slane %v380, 4
      %v382 = vadd.f32 %v380, %v381
      %v383 = vrot.slane %v382, 2
      %v384 = vadd.f32 %v382, %v383
      %v385 = vrot.slane %v384, 1
      %v386 = vadd.f32 %v384, %v385
      %v387 = vadd.f32 %v373, %v375
      %v388 = vsel %vm278, %v377, 0.0
      %v389 = vadd.f32 %v387, %v388
      %v390 = vrot.slane %v389, 4
      %v391 = vadd.f32 %v389, %v390
      %v392 = vrot.slane %v391, 2
      %v393 = vadd.f32 %v391, %v392
      %v394 = vrot.slane %v393, 1
      %v395 = vadd.f32 %v393, %v394
      %v396 = vrcp.pop %v323
      %v397 = vrcp.pop %v332
      %v398 = vmul.f32 %v323, %v396
      %v399 = vmul.f32 %v332, %v397
      %v400 = vsub.f32 2.0, %v398
      %v401 = vsub.f32 2.0, %v399
      %v402 = vmul.f32 %v396, %v400
      %v403 = vmul.f32 %v397, %v401
      %v404 = vmul.f32 %v386, %v402
      %v405 = vmul.f32 %v395, %v403
      %v406 = vmax.f32 %v404, 1e-07
      %v407 = vmax.f32 %v405, 1e-07
      %v408 = vmin.f32 %v406, 0.9999999
      %v409 = vmin.f32 %v407, 0.9999999
      %v410 = vsub.f32 1.0, %v408
      %v411 = vsub.f32 1.0, %v409
      %vm412 = vcmp.ne.s32.totalorder %v274, 255
      %v413 = vsel %vm412, 1, 0
      %v414 = vcvt.s32.f32 %v413
      %v415 = vsub.f32 0.0, %v410
      %v416 = vsub.f32 0.0, %v411
      %v417 = vlog2.pop %v408
      %v418 = vmul.f32 %v417, 0.6931472
      %v419 = vlog2.pop %v409
      %v420 = vmul.f32 %v419, 0.6931472
      %v421 = vmul.f32 %v415, %v418
      %v422 = vmul.f32 %v416, %v420
      %v424 = vlaneseq
      %v425 = vshrl.u32 %v424, 7
      %v426 = vsub.s32 0, %v425
      %v427 = vrot.slane %v414, %v426
      %v428 = vlaneseq
      %v429 = vshrl.u32 %v428, 7
      %v430 = vsub.s32 1, %v429
      %v431 = vrot.slane %v414, %v430
      %v434 = vmul.f32 %v421, %v427
      %v435 = vmul.f32 %v422, %v431
      %s436 = sadd.s32 %s20, %s21
      %s437 = smul.u32 %s436, 256
      %v438 = vlaneseq
      %v439 = vand.u32 %v438, 127
      %v440 = vadd.s32 %v439, 128
      %v441 = vstv %s437
      %v442 = vadd.s32 %v441, %v439
      %v443 = vadd.s32 %v441, %v440
      %vm444 = vcmp.lt.s32.totalorder %v442, 256
      %vm445 = vcmp.lt.s32.totalorder %v443, 256
      %v446 = vsel %vm444, %v434, 0.0
      %v447 = vsel %vm445, %v435, 0.0
      %v448 = vsel %vm444, %v427, 0.0
      %v449 = vsel %vm445, %v431, 0.0
      %v450 = vld [vmem:[%s262] ss:$2 sm:$0x3]
      %v453 = vcombine.low %v446, %v447
      %v455 = vunpack.c.l.s4 1966171168
      %v456 = vunpack.c.0.s8 %v455
      %v457 = vlaneseq
      %v458 = vshrl.u32 %v457, 7
      %v459 = vsub.s32 %v456, %v458
      %v460 = vrot.slane %v453, %v459
      %v462 = vunpack.c.l.s4 1966171168
      %v463 = vunpack.c.0.s8 %v462
      %v464 = vlaneseq
      %v465 = vshrl.u32 %v464, 7
      %v466 = vsub.s32 %v463, %v465
      %v467 = vrot.slane %v460, %v466
      %v469 = vadd.f32 %v450, %v467
      %v470 = vlaneseq
      %vm471 = vcmp.ge.s32.totalorder %v470, 0
      %vm472 = vcmp.lt.s32.totalorder %v470, 256
      %vm473 = vmand %vm471, %vm472
      %474 = vst.msk [vmem:[%s262] ss:$2 sm:$0x3] %vm473, %v469
      %s475 = scalar_lea.vmem %s262, 1
      %v476 = vld [vmem:[%s475] ss:$2 sm:$0x3]
      %v479 = vcombine.low %v448, %v449
      %v481 = vunpack.c.l.s4 1966171168
      %v482 = vunpack.c.0.s8 %v481
      %v483 = vlaneseq
      %v484 = vshrl.u32 %v483, 7
      %v485 = vsub.s32 %v482, %v484
      %v486 = vrot.slane %v479, %v485
      %v488 = vunpack.c.l.s4 1966171168
      %v489 = vunpack.c.0.s8 %v488
      %v490 = vlaneseq
      %v491 = vshrl.u32 %v490, 7
      %v492 = vsub.s32 %v489, %v491
      %v493 = vrot.slane %v486, %v492
      %v495 = vadd.f32 %v476, %v493
      %496 = vst.msk [vmem:[%s475] ss:$2 sm:$0x3] %vm473, %v495
      %p497 = scmp.lt.s32.totalorder %s19, 1
      %s498 = scalar_select %p497, %s19, 1
      %p499 = scmp.lt.s32.totalorder %s20, 0
      %s500 = scalar_select %p499, %s20, 0
      %s501 = smul.addr %s500, 2
      %s502 = smul.addr %s498, 2
      %s503 = sadd.s32 %s501, %s502
      %s504 = smul.addr %s503, 2
      %s505 = scalar_lea.vmem %s3, %s504
      // Predicated region
      $region37: #{static_loss.1} parent=31 // pred_check
        %p506 = pneg %p134
      $region38: #{static_loss.1} parent=31 // pred_check_branch
        %508 = sbr.rel (%p506) target = $region40
      $region39: #{static_loss.1} parent=31 // pred_region
        _
      $region40: #{static_loss.1} parent=31 // pred_fallthru
        _
    $region32: #{static_loss.1} parent=5 // pred_fallthru
      _
    %p509 = scmp.le.s32.totalorder 2, %s9
    // Predicated region
    $region41: #{static_loss.1} parent=5 // pred_check
      %p510 = pneg %p509
    $region42: #{static_loss.1} parent=5 // pred_check_branch
      %512 = sbr.rel (%p510) target = $region44
    $region43: #{static_loss.1} parent=5 // pred_region
      %s513 = ssub.s32 %s9, 2
      // Predicated region
      $region45: #{static_loss.1} parent=43 // pred_check
        %p514 = pneg %p140
      $region46: #{static_loss.1} parent=43 // pred_check_branch
        %516 = sbr.rel (%p514) target = $region48
      $region47: #{static_loss.1} parent=43 // pred_region
        %p517 = scmp.lt.s32.totalorder %s22, 1
        %s518 = scalar_select %p517, %s22, 1
        %p519 = scmp.lt.s32.totalorder %s23, 0
        %s520 = scalar_select %p519, %s23, 0
        %s521 = smul.addr %s520, 2
        %s522 = smul.addr %s518, 2
        %s523 = sadd.s32 %s521, %s522
        %s524 = smul.addr %s523, 2
        %s525 = scalar_lea.vmem %s3, %s524
      $region48: #{static_loss.1} parent=43 // pred_fallthru
        _
    $region44: #{static_loss.1} parent=5 // pred_fallthru
      _
  $region6: #{static_loss.1} parent=0 // loop_footer
    %s13 = sadd.s32 1, %s9
  $region7: #{static_loss.1} parent=0 // loop_footer_branch
    %8 = sbr.rel target = $region3
  $region8: #{static_loss.1} parent=0 // loop_exit
    _

</llo_original>
